<compile_context>
chip_gen: v6e
topology: v6e:2x2x1
jax: 0.10.0
libtpu: 0.0.40
codegen_flags: <defaults>
</compile_context>

<pallas_src>
import math

import jax
import jax.numpy as jnp
from jax.experimental import pallas as pl
from jax.experimental.pallas import tpu as pltpu

NUM_OF_USER = 8              # stands in for args.user
IN_DIM = 2 * NUM_OF_USER     # 16
H1 = 128
H2 = 16
OUT_DIM = NUM_OF_USER        # 8

MAX_BATCH_TILE = 4096        # review: 2048-4096 rows/tile amortizes step overhead
SINGLE_TILE_MAX = 512        # below this, one full-array block (no padding/steps)
ROW_ALIGN = 16               # bf16 sublane packing for the x tile


def _cdiv(a, b):
    return -(-a // b)


def _round_up(n, m):
    return _cdiv(n, m) * m


def _gelu_tanh(x):
    # 0.5 * x * (1 + tanh(sqrt(2/pi) * (x + 0.044715 * x^3)))  -- matches the
    # custom GELU class in the PyTorch module.
    c = math.sqrt(2.0 / math.pi)
    return 0.5 * x * (1.0 + jnp.tanh(c * (x + 0.044715 * x * x * x)))


def net_kernel(x_ref, w1_ref, b1_ref, w2_ref, b2_ref, w3_ref, b3_ref, o_ref):
    # bf16 matmul operands, f32 MXU accumulation; elementwise math in f32.
    h1 = jnp.dot(x_ref[...], w1_ref[...], preferred_element_type=jnp.float32)
    h1 = _gelu_tanh(h1 + b1_ref[...])

    h2 = jnp.dot(h1.astype(jnp.bfloat16), w2_ref[...],
                 preferred_element_type=jnp.float32)
    h2 = _gelu_tanh(h2 + b2_ref[...])

    logits = jnp.dot(h2.astype(jnp.bfloat16), w3_ref[...],
                     preferred_element_type=jnp.float32)
    logits = logits + b3_ref[...]

    # Numerically stable softmax over the (small, unpadded) output dim.
    # Exact normalization: approx reciprocal was not accurate enough for the
    # rows-sum-to-1 contract; the EUP cost difference is negligible here.
    m = jnp.max(logits, axis=-1, keepdims=True)
    e = jnp.exp(logits - m)
    denom = jnp.sum(e, axis=-1, keepdims=True)
    o_ref[...] = (e / denom).astype(o_ref.dtype)


def _plan_batch_tiles(batch):
    """Return (num_tiles, tile_rows, padded_batch) for the 1-D batch grid."""
    if batch <= SINGLE_TILE_MAX:
        # One full-array block: any shape is legal, zero padding, zero slicing.
        return 1, batch, batch
    # >=2 tiles so the "parallel" axis can feed both v7x TensorCores; cap the
    # tile at MAX_BATCH_TILE and round rows to 16 so tail padding stays tiny.
    nb = max(2, _cdiv(batch, MAX_BATCH_TILE))
    tb = _round_up(_cdiv(batch, nb), ROW_ALIGN)
    return nb, tb, nb * tb


@jax.jit
def net_forward(x, w1, b1, w2, b2, w3, b3):
    batch, in_dim = x.shape
    out_dim = w3.shape[1]

    nb, tb, bp = _plan_batch_tiles(batch)

    xp = x.astype(jnp.bfloat16)
    if bp != batch:
        xp = jnp.pad(xp, ((0, bp - batch), (0, 0)))

    w1b = w1.astype(jnp.bfloat16)
    w2b = w2.astype(jnp.bfloat16)
    w3b = w3.astype(jnp.bfloat16)

    def fixed(shape):
        # Constant index_map: weight/bias tiles stay VMEM-resident across grid.
        return pl.BlockSpec(shape, lambda i: tuple(0 for _ in shape))

    flops = 2 * bp * (in_dim * H1 + H1 * H2 + H2 * out_dim)
    transcendentals = bp * (H1 + H2 + out_dim)            # tanh + tanh + exp
    bytes_accessed = (xp.size * 2 + w1b.size * 2 + w2b.size * 2 + w3b.size * 2
                      + b1.size * 4 + b2.size * 4 + b3.size * 4
                      + bp * out_dim * 4)

    out = pl.pallas_call(
        net_kernel,
        out_shape=jax.ShapeDtypeStruct((bp, out_dim), jnp.float32),
        grid=(nb,),
        in_specs=[
            pl.BlockSpec((tb, in_dim), lambda i: (i, 0)),
            fixed(w1b.shape), fixed(b1.shape),
            fixed(w2b.shape), fixed(b2.shape),
            fixed(w3b.shape), fixed(b3.shape),
        ],
        out_specs=pl.BlockSpec((tb, out_dim), lambda i: (i, 0)),
        compiler_params=pltpu.CompilerParams(
            dimension_semantics=("parallel",),
            vmem_limit_bytes=32 * 1024 * 1024),
        cost_estimate=pl.CostEstimate(
            flops=flops,
            transcendentals=transcendentals,
            bytes_accessed=bytes_accessed),
    )(xp, w1b, b1, w2b, b2, w3b, b3)

    if bp != batch:
        # Only a sub-tile tail (< 16 * num_tiles rows) over an out_dim-wide
        # buffer -- negligible compared to the old padded (bp, 128) re-read.
        out = out[:batch]
    return out


def init_params(key):
    """Xavier-uniform weights (gain=1), zero biases -- matches weights_init_."""
    def xavier(k, fan_in, fan_out):
        limit = math.sqrt(6.0 / (fan_in + fan_out))
        # Stored as (in, out) so the kernel computes x @ W (== PyTorch x @ W.T).
        return jax.random.uniform(k, (fan_in, fan_out), jnp.float32, -limit, limit)

    k1, k2, k3 = jax.random.split(key, 3)
    w1 = xavier(k1, IN_DIM, H1)
    b1 = jnp.zeros((1, H1), jnp.float32)
    w2 = xavier(k2, H1, H2)
    b2 = jnp.zeros((1, H2), jnp.float32)
    w3 = xavier(k3, H2, OUT_DIM)
    b3 = jnp.zeros((1, OUT_DIM), jnp.float32)
    return w1, b1, w2, b2, w3, b3


def reference_forward(x, w1, b1, w2, b2, w3, b3):
    h1 = _gelu_tanh(x @ w1 + b1)
    h2 = _gelu_tanh(h1 @ w2 + b2)
    logits = h2 @ w3 + b3
    return jax.nn.softmax(logits, axis=1)


if __name__ == "__main__":
    key = jax.random.PRNGKey(0)
    k_params, k_x = jax.random.split(key)

    params = init_params(k_params)
    batch = 8
    x = jax.random.normal(k_x, (batch, IN_DIM), jnp.float32)

    out = net_forward(x, *params)
    out = jax.block_until_ready(out)

    ref = reference_forward(x, *params)
    assert out.shape == (batch, OUT_DIM)
    # bf16 matmul operands => loosened tolerance vs the all-f32 reference.
    assert jnp.allclose(out, ref, atol=2e-2, rtol=0.0), "mismatch vs JAX reference"
    # Softmax rows must sum to 1 (exact normalization; only f32 rounding error).
    assert jnp.allclose(jnp.sum(out, axis=1), jnp.ones((batch,)), atol=1e-3)

    print("KERNEL_OK")
</pallas_src>

<mosaic_0001>
module attributes {stable_mosaic.version = 11 : i64} {
  func.func @net_kernel(%arg0: i32, %arg1: memref<8x16xbf16, #tpu.memory_space<vmem>>, %arg2: memref<16x128xbf16, #tpu.memory_space<vmem>>, %arg3: memref<1x128xf32, #tpu.memory_space<vmem>>, %arg4: memref<128x16xbf16, #tpu.memory_space<vmem>>, %arg5: memref<1x16xf32, #tpu.memory_space<vmem>>, %arg6: memref<16x8xbf16, #tpu.memory_space<vmem>>, %arg7: memref<1x8xf32, #tpu.memory_space<vmem>>, %arg8: memref<8x8xf32, #tpu.memory_space<vmem>>) attributes {dimension_semantics = [#tpu.dimension_semantics<parallel>], iteration_bounds = array<i64: 1>, scalar_prefetch = 0 : i64, scratch_operands = 0 : i64, tpu.core_type = #tpu.core_type<tc>, window_params = [{transform_indices = @transform_0, window_bounds = array<i64: 8, 16>}, {pipeline_mode = #tpu.pipeline_mode<synchronous>, transform_indices = @transform_1, window_bounds = array<i64: 16, 128>}, {pipeline_mode = #tpu.pipeline_mode<synchronous>, transform_indices = @transform_2, window_bounds = array<i64: 1, 128>}, {pipeline_mode = #tpu.pipeline_mode<synchronous>, transform_indices = @transform_3, window_bounds = array<i64: 128, 16>}, {pipeline_mode = #tpu.pipeline_mode<synchronous>, transform_indices = @transform_4, window_bounds = array<i64: 1, 16>}, {pipeline_mode = #tpu.pipeline_mode<synchronous>, transform_indices = @transform_5, window_bounds = array<i64: 16, 8>}, {pipeline_mode = #tpu.pipeline_mode<synchronous>, transform_indices = @transform_6, window_bounds = array<i64: 1, 8>}, {transform_indices = @transform_7, window_bounds = array<i64: 8, 8>}]} {
    %c0 = arith.constant 0 : index
    %c0_0 = arith.constant 0 : index
    %0 = vector.load %arg1[%c0, %c0_0] : memref<8x16xbf16, #tpu.memory_space<vmem>>, vector<8x16xbf16>
    %c0_1 = arith.constant 0 : index
    %c0_2 = arith.constant 0 : index
    %1 = vector.load %arg2[%c0_1, %c0_2] : memref<16x128xbf16, #tpu.memory_space<vmem>>, vector<16x128xbf16>
    %cst = arith.constant dense<0.000000e+00> : vector<8x128xf32>
    %2 = tpu.matmul %0, %1, %cst {dimension_numbers = #tpu.dot_dimension_numbers<[1], [0], [0], [1], [0, 0, 1, 1], [], []>} : vector<8x16xbf16>, vector<16x128xbf16>, vector<8x128xf32> -> vector<8x128xf32>
    %c0_3 = arith.constant 0 : index
    %c0_4 = arith.constant 0 : index
    %3 = vector.load %arg3[%c0_3, %c0_4] : memref<1x128xf32, #tpu.memory_space<vmem>>, vector<1x128xf32>
    %4 = vector.broadcast %3 : vector<1x128xf32> to vector<8x128xf32>
    %5 = arith.addf %2, %4 : vector<8x128xf32>
    %cst_5 = arith.constant 5.000000e-01 : f32
    %6 = vector.broadcast %cst_5 : f32 to vector<8x128xf32>
    %7 = arith.mulf %6, %5 : vector<8x128xf32>
    %cst_6 = arith.constant 4.471500e-02 : f32
    %8 = vector.broadcast %cst_6 : f32 to vector<8x128xf32>
    %9 = arith.mulf %8, %5 : vector<8x128xf32>
    %10 = arith.mulf %9, %5 : vector<8x128xf32>
    %11 = arith.mulf %10, %5 : vector<8x128xf32>
    %12 = arith.addf %5, %11 : vector<8x128xf32>
    %cst_7 = arith.constant 0.797884583 : f32
    %13 = vector.broadcast %cst_7 : f32 to vector<8x128xf32>
    %14 = arith.mulf %13, %12 : vector<8x128xf32>
    %15 = math.tanh %14 : vector<8x128xf32>
    %cst_8 = arith.constant 1.000000e+00 : f32
    %16 = vector.broadcast %cst_8 : f32 to vector<8x128xf32>
    %17 = arith.addf %16, %15 : vector<8x128xf32>
    %18 = arith.mulf %7, %17 : vector<8x128xf32>
    %19 = arith.truncf %18 : vector<8x128xf32> to vector<8x128xbf16>
    %c0_9 = arith.constant 0 : index
    %c0_10 = arith.constant 0 : index
    %20 = vector.load %arg4[%c0_9, %c0_10] : memref<128x16xbf16, #tpu.memory_space<vmem>>, vector<128x16xbf16>
    %cst_11 = arith.constant dense<0.000000e+00> : vector<8x16xf32>
    %21 = tpu.matmul %19, %20, %cst_11 {dimension_numbers = #tpu.dot_dimension_numbers<[1], [0], [0], [1], [0, 0, 1, 1], [], []>} : vector<8x128xbf16>, vector<128x16xbf16>, vector<8x16xf32> -> vector<8x16xf32>
    %c0_12 = arith.constant 0 : index
    %c0_13 = arith.constant 0 : index
    %22 = vector.load %arg5[%c0_12, %c0_13] : memref<1x16xf32, #tpu.memory_space<vmem>>, vector<1x16xf32>
    %23 = vector.broadcast %22 : vector<1x16xf32> to vector<8x16xf32>
    %24 = arith.addf %21, %23 : vector<8x16xf32>
    %cst_14 = arith.constant 5.000000e-01 : f32
    %25 = vector.broadcast %cst_14 : f32 to vector<8x16xf32>
    %26 = arith.mulf %25, %24 : vector<8x16xf32>
    %cst_15 = arith.constant 4.471500e-02 : f32
    %27 = vector.broadcast %cst_15 : f32 to vector<8x16xf32>
    %28 = arith.mulf %27, %24 : vector<8x16xf32>
    %29 = arith.mulf %28, %24 : vector<8x16xf32>
    %30 = arith.mulf %29, %24 : vector<8x16xf32>
    %31 = arith.addf %24, %30 : vector<8x16xf32>
    %cst_16 = arith.constant 0.797884583 : f32
    %32 = vector.broadcast %cst_16 : f32 to vector<8x16xf32>
    %33 = arith.mulf %32, %31 : vector<8x16xf32>
    %34 = math.tanh %33 : vector<8x16xf32>
    %cst_17 = arith.constant 1.000000e+00 : f32
    %35 = vector.broadcast %cst_17 : f32 to vector<8x16xf32>
    %36 = arith.addf %35, %34 : vector<8x16xf32>
    %37 = arith.mulf %26, %36 : vector<8x16xf32>
    %38 = arith.truncf %37 : vector<8x16xf32> to vector<8x16xbf16>
    %c0_18 = arith.constant 0 : index
    %c0_19 = arith.constant 0 : index
    %39 = vector.load %arg6[%c0_18, %c0_19] : memref<16x8xbf16, #tpu.memory_space<vmem>>, vector<16x8xbf16>
    %cst_20 = arith.constant dense<0.000000e+00> : vector<8x8xf32>
    %40 = tpu.matmul %38, %39, %cst_20 {dimension_numbers = #tpu.dot_dimension_numbers<[1], [0], [0], [1], [0, 0, 1, 1], [], []>} : vector<8x16xbf16>, vector<16x8xbf16>, vector<8x8xf32> -> vector<8x8xf32>
    %c0_21 = arith.constant 0 : index
    %c0_22 = arith.constant 0 : index
    %41 = vector.load %arg7[%c0_21, %c0_22] : memref<1x8xf32, #tpu.memory_space<vmem>>, vector<1x8xf32>
    %42 = vector.broadcast %41 : vector<1x8xf32> to vector<8x8xf32>
    %43 = arith.addf %40, %42 : vector<8x8xf32>
    %cst_23 = arith.constant dense<0xFF800000> : vector<8xf32>
    %44 = vector.multi_reduction <maximumf>, %43, %cst_23 [1] : vector<8x8xf32> to vector<8xf32>
    %45 = vector.shape_cast %44 : vector<8xf32> to vector<8x1xf32>
    %46 = vector.broadcast %45 : vector<8x1xf32> to vector<8x8xf32>
    %47 = arith.subf %43, %46 : vector<8x8xf32>
    %48 = math.exp %47 : vector<8x8xf32>
    %cst_24 = arith.constant dense<0.000000e+00> : vector<8xf32>
    %49 = vector.multi_reduction <add>, %48, %cst_24 [1] : vector<8x8xf32> to vector<8xf32>
    %50 = vector.shape_cast %49 : vector<8xf32> to vector<8x1xf32>
    %51 = vector.broadcast %50 : vector<8x1xf32> to vector<8x8xf32>
    %52 = arith.divf %48, %51 : vector<8x8xf32>
    %c0_25 = arith.constant 0 : index
    %c0_26 = arith.constant 0 : index
    %53 = vector.load %arg8[%c0_25, %c0_26] : memref<8x8xf32, #tpu.memory_space<vmem>>, vector<8x8xf32>
    tpu.vector_store %arg8[%c0_25, %c0_26], %52 {strides = array<i32>} : memref<8x8xf32, #tpu.memory_space<vmem>>, vector<8x8xf32>,
    return
  }
  func.func @transform_0(%arg0: i32) -> (i32, i32) {
    %c0_i32 = arith.constant 0 : i32
    %c0_i32_0 = arith.constant 0 : i32
    return %arg0, %c0_i32 : i32, i32
  }
  func.func @transform_1(%arg0: i32) -> (i32, i32) {
    %c0_i32 = arith.constant 0 : i32
    %c0_i32_0 = arith.constant 0 : i32
    %c0_i32_1 = arith.constant 0 : i32
    return %c0_i32, %c0_i32_0 : i32, i32
  }
  func.func @transform_2(%arg0: i32) -> (i32, i32) {
    %c0_i32 = arith.constant 0 : i32
    %c0_i32_0 = arith.constant 0 : i32
    %c0_i32_1 = arith.constant 0 : i32
    return %c0_i32, %c0_i32_0 : i32, i32
  }
  func.func @transform_3(%arg0: i32) -> (i32, i32) {
    %c0_i32 = arith.constant 0 : i32
    %c0_i32_0 = arith.constant 0 : i32
    %c0_i32_1 = arith.constant 0 : i32
    return %c0_i32, %c0_i32_0 : i32, i32
  }
  func.func @transform_4(%arg0: i32) -> (i32, i32) {
    %c0_i32 = arith.constant 0 : i32
    %c0_i32_0 = arith.constant 0 : i32
    %c0_i32_1 = arith.constant 0 : i32
    return %c0_i32, %c0_i32_0 : i32, i32
  }
  func.func @transform_5(%arg0: i32) -> (i32, i32) {
    %c0_i32 = arith.constant 0 : i32
    %c0_i32_0 = arith.constant 0 : i32
    %c0_i32_1 = arith.constant 0 : i32
    return %c0_i32, %c0_i32_0 : i32, i32
  }
  func.func @transform_6(%arg0: i32) -> (i32, i32) {
    %c0_i32 = arith.constant 0 : i32
    %c0_i32_0 = arith.constant 0 : i32
    %c0_i32_1 = arith.constant 0 : i32
    return %c0_i32, %c0_i32_0 : i32, i32
  }
  func.func @transform_7(%arg0: i32) -> (i32, i32) {
    %c0_i32 = arith.constant 0 : i32
    %c0_i32_0 = arith.constant 0 : i32
    return %arg0, %c0_i32 : i32, i32
  }
}

</mosaic_0001>

<llo_original>
// kernel: net_forward.1
$region0: #{net_forward.1}
  #allocation0 [shape = 'u32[]', space=smem, size = 0x4, offset = 0x4, fixed_abs, tag = 'smem constant byte address 0x4 - core index']
  #allocation1 [shape = 'u32[144,128]{1,0:T(1,128)}', space=vmem, size = 0x12000, scoped, tag = 'internal scratch']
  %s0 = inlined_call_operand.vmem [shape: bf16[8,16], index: 0, kind: input, shape index: {}]
  %s1 = inlined_call_operand.vmem [shape: bf16[16,128], index: 1, kind: input, shape index: {}]
  %s2 = inlined_call_operand.vmem [shape: f32[1,128], index: 2, kind: input, shape index: {}]
  %s3 = inlined_call_operand.vmem [shape: bf16[128,16], index: 3, kind: input, shape index: {}]
  %s4 = inlined_call_operand.vmem [shape: f32[1,16], index: 4, kind: input, shape index: {}]
  %s5 = inlined_call_operand.vmem [shape: bf16[16,8], index: 5, kind: input, shape index: {}]
  %s6 = inlined_call_operand.vmem [shape: f32[1,8], index: 6, kind: input, shape index: {}]
  %s7 = inlined_call_operand.hbm [shape: f32[8,8], index: 7, kind: output, shape index: {}]
  %s8 = sld [smem:[#allocation0]]
  $region38: #{net_forward.1} parent=0
    _
  %s10 = ssub.s32 1, %s8
  %s11 = scalar_select 0, %s10, %s8
  $region1: #{net_forward.1} parent=0
    #allocation2 [shape = 'u8[4096]{0}', space=vmem, size = 0x1000, scoped, tag = 'output window, operand 0, single buffered']
    #allocation3 [shape = 's32[1]{0}', space=sflag, size = 0x4, scoped, tag = 'scoped memory for net_forward.1']
    %12 = vsyncpa [#allocation3], 0
    // Predicated region
    $region2: #{net_forward.1} parent=1 // pred_check
      _
    $region3: #{net_forward.1} parent=1 // pred_check_branch
      %14 = sbr.rel (0) target = $region5
    $region4: #{net_forward.1} parent=1 // pred_region
      _
    $region5: #{net_forward.1} parent=1 // pred_fallthru
      _
    // Predicated region
    $region6: #{net_forward.1} parent=1 // pred_check
      _
    $region7: #{net_forward.1} parent=1 // pred_check_branch
      %16 = sbr.rel (0) target = $region9
    $region8: #{net_forward.1} parent=1 // pred_region
      _
    $region9: #{net_forward.1} parent=1 // pred_fallthru
      _
    // Predicated region
    $region10: #{net_forward.1} parent=1 // pred_check
      _
    $region11: #{net_forward.1} parent=1 // pred_check_branch
      %18 = sbr.rel (0) target = $region13
    $region12: #{net_forward.1} parent=1 // pred_region
      _
    $region13: #{net_forward.1} parent=1 // pred_fallthru
      _
    // Predicated region
    $region14: #{net_forward.1} parent=1 // pred_check
      _
    $region15: #{net_forward.1} parent=1 // pred_check_branch
      %20 = sbr.rel (0) target = $region17
    $region16: #{net_forward.1} parent=1 // pred_region
      _
    $region17: #{net_forward.1} parent=1 // pred_fallthru
      _
    // Predicated region
    $region18: #{net_forward.1} parent=1 // pred_check
      _
    $region19: #{net_forward.1} parent=1 // pred_check_branch
      %22 = sbr.rel (0) target = $region21
    $region20: #{net_forward.1} parent=1 // pred_region
      _
    $region21: #{net_forward.1} parent=1 // pred_fallthru
      _
    // Predicated region
    $region22: #{net_forward.1} parent=1 // pred_check
      _
    $region23: #{net_forward.1} parent=1 // pred_check_branch
      %24 = sbr.rel (0) target = $region25
    $region24: #{net_forward.1} parent=1 // pred_region
      _
    $region25: #{net_forward.1} parent=1 // pred_fallthru
      _
    // Predicated region
    $region26: #{net_forward.1} parent=1 // pred_check
      _
    $region27: #{net_forward.1} parent=1 // pred_check_branch
      %26 = sbr.rel (0) target = $region29
    $region28: #{net_forward.1} parent=1 // pred_region
      _
    $region29: #{net_forward.1} parent=1 // pred_fallthru
      _
    %v28 = vld [vmem:[%s0] sm:$0xf]
    %v29 = vld [vmem:[%s1] sm:$0xf]
    %v30 = vld [vmem:[%s1 + $0x4] sm:$0xf]
    %v31 = vld [vmem:[%s2] sm:$0x1]
    %v33 = vlaneseq
    %v34 = vshrl.u32 %v33, 7
    %v35 = vsub.s32 0, %v34
    %v36 = vrot.slane %v31, %v35
    %v40 = vunpack.c.l.b16 %v29
    %v41 = vunpack.c.l.b16 %v30
    %v42 = vpack.c.b16 %v41, %v40
    %vm44 = vcmask 130048
    %v46 = vsel %vm44, %v28, 0
    %48 = vmatprep.subr.bf16.mxu0 0
    %49 = vmatpush1.bf16.msra.mxu0 0
    %50 = vmatprep.subr.bf16.mxu0 0
    %51 = vmatpush1.bf16.msra.mxu0 0
    %52 = vmatprep.subr.bf16.mxu0 0
    %53 = vmatpush1.bf16.msra.mxu0 0
    %54 = vmatprep.subr.bf16.mxu0 0
    %55 = vmatpush1.bf16.msra.mxu0 0
    %56 = vmatprep.subr.bf16.mxu0 0
    %57 = vmatpush1.bf16.msra.mxu0 0
    %58 = vmatprep.subr.bf16.mxu0 0
    %59 = vmatpush1.bf16.msra.mxu0 0
    %60 = vmatprep.subr.bf16.mxu0 0
    %61 = vmatpush1.bf16.msra.mxu0 0
    %62 = vmatprep.subr.bf16.mxu0 0
    %63 = vmatpush1.bf16.msra.mxu0 %v42
    %64 = vmatprep.subr.bf16.mxu0 0
    %65 = vmatpush2.bf16.msra.mxu0 0
    %66 = vmatprep.subr.bf16.mxu0 0
    %67 = vmatpush2.bf16.msra.mxu0 0
    %68 = vmatprep.subr.bf16.mxu0 0
    %69 = vmatpush2.bf16.msra.mxu0 0
    %70 = vmatprep.subr.bf16.mxu0 0
    %71 = vmatpush2.bf16.msra.mxu0 0
    %72 = vmatprep.subr.bf16.mxu0 0
    %73 = vmatpush2.bf16.msra.mxu0 0
    %74 = vmatprep.subr.bf16.mxu0 0
    %75 = vmatpush2.bf16.msra.mxu0 0
    %76 = vmatprep.subr.bf16.mxu0 0
    %77 = vmatpush2.bf16.msra.mxu0 0
    %78 = vmatprep.subr.bf16.mxu0 0
    %79 = vmatpush2.bf16.msra.mxu0 0
    %80 = vmatprep.mubr.bf16.mxu0 0
    %81 = vmatmul.mubr.bf16.gmra.mxu0 %v46
    %v82 = vpop.f32.mrf.mxu0
    %v83 = vadd.f32 %v36, %v82
    %v84 = vpop.f32.mrf.mxu0
    %v85 = vpop.f32.mrf.mxu0
    %v86 = vpop.f32.mrf.mxu0
    %87 = vdwg.mxu0
    %v88 = vmul.f32 %v83, 0.5
    %v89 = vmul.f32 %v83, 0.044715
    %v90 = vmul.f32 %v89, %v83
    %v91 = vmul.f32 %v90, %v83
    %v92 = vadd.f32 %v83, %v91
    %v93 = vmul.f32 %v92, 0.7978846
    %v94 = vtanh.pop %v93
    %v95 = vadd.f32 %v94, 1.0
    %v96 = vmul.f32 %v88, %v95
    %v97 = vpack.c.bf16 %v96, %v96
    %v98 = vld [vmem:[%s3] sm:$0xf]
    %v99 = vld [vmem:[%s3 + $0x4] sm:$0xf]
    %v100 = vld [vmem:[%s3 + $0x8] sm:$0xf]
    %v101 = vld [vmem:[%s3 + $0xc] sm:$0xf]
    %v102 = vld [vmem:[%s3 + $0x10] sm:$0xf]
    %v103 = vld [vmem:[%s3 + $0x14] sm:$0xf]
    %v104 = vld [vmem:[%s3 + $0x18] sm:$0xf]
    %v105 = vld [vmem:[%s3 + $0x1c] sm:$0xf]
    %v106 = vld [vmem:[%s3 + $0x20] sm:$0xf]
    %v107 = vld [vmem:[%s3 + $0x24] sm:$0xf]
    %v108 = vld [vmem:[%s3 + $0x28] sm:$0xf]
    %v109 = vld [vmem:[%s3 + $0x2c] sm:$0xf]
    %v110 = vld [vmem:[%s3 + $0x30] sm:$0xf]
    %v111 = vld [vmem:[%s3 + $0x34] sm:$0xf]
    %v112 = vld [vmem:[%s3 + $0x38] sm:$0xf]
    %v113 = vld [vmem:[%s3 + $0x3c] sm:$0xf]
    %v114 = vld [vmem:[%s4] sm:$0x1]
    %v116 = vlaneseq
    %v117 = vshrl.u32 %v116, 7
    %v118 = vsub.s32 0, %v117
    %v119 = vrot.slane %v114, %v118
    %v137 = vunpack.c.l.b16 %v98
    %v138 = vunpack.c.l.b16 %v99
    %v139 = vunpack.c.l.b16 %v100
    %v140 = vunpack.c.l.b16 %v101
    %v141 = vunpack.c.l.b16 %v102
    %v142 = vunpack.c.l.b16 %v103
    %v143 = vunpack.c.l.b16 %v104
    %v144 = vunpack.c.l.b16 %v105
    %v145 = vunpack.c.l.b16 %v106
    %v146 = vunpack.c.l.b16 %v107
    %v147 = vunpack.c.l.b16 %v108
    %v148 = vunpack.c.l.b16 %v109
    %v149 = vunpack.c.l.b16 %v110
    %v150 = vunpack.c.l.b16 %v111
    %v151 = vunpack.c.l.b16 %v112
    %v152 = vunpack.c.l.b16 %v113
    %v153 = vpack.c.b16 %v138, %v137
    %v154 = vpack.c.b16 %v140, %v139
    %v155 = vpack.c.b16 %v142, %v141
    %v156 = vpack.c.b16 %v144, %v143
    %v157 = vpack.c.b16 %v146, %v145
    %v158 = vpack.c.b16 %v148, %v147
    %v159 = vpack.c.b16 %v150, %v149
    %v160 = vpack.c.b16 %v152, %v151
    %169 = vmatprep.subr.bf16.mxu0 0
    %170 = vmatpush1.bf16.msra.mxu0 %v160
    %171 = vmatprep.subr.bf16.mxu0 0
    %172 = vmatpush1.bf16.msra.mxu0 %v159
    %173 = vmatprep.subr.bf16.mxu0 0
    %174 = vmatpush1.bf16.msra.mxu0 %v158
    %175 = vmatprep.subr.bf16.mxu0 0
    %176 = vmatpush1.bf16.msra.mxu0 %v157
    %177 = vmatprep.subr.bf16.mxu0 0
    %178 = vmatpush1.bf16.msra.mxu0 %v156
    %179 = vmatprep.subr.bf16.mxu0 0
    %180 = vmatpush1.bf16.msra.mxu0 %v155
    %181 = vmatprep.subr.bf16.mxu0 0
    %182 = vmatpush1.bf16.msra.mxu0 %v154
    %183 = vmatprep.subr.bf16.mxu0 0
    %184 = vmatpush1.bf16.msra.mxu0 %v153
    %185 = vmatprep.subr.bf16.mxu0 0
    %186 = vmatpush2.bf16.msra.mxu0 0
    %187 = vmatprep.subr.bf16.mxu0 0
    %188 = vmatpush2.bf16.msra.mxu0 0
    %189 = vmatprep.subr.bf16.mxu0 0
    %190 = vmatpush2.bf16.msra.mxu0 0
    %191 = vmatprep.subr.bf16.mxu0 0
    %192 = vmatpush2.bf16.msra.mxu0 0
    %193 = vmatprep.subr.bf16.mxu0 0
    %194 = vmatpush2.bf16.msra.mxu0 0
    %195 = vmatprep.subr.bf16.mxu0 0
    %196 = vmatpush2.bf16.msra.mxu0 0
    %197 = vmatprep.subr.bf16.mxu0 0
    %198 = vmatpush2.bf16.msra.mxu0 0
    %199 = vmatprep.subr.bf16.mxu0 0
    %200 = vmatpush2.bf16.msra.mxu0 0
    %201 = vmatprep.mubr.bf16.mxu0 0
    %202 = vmatmul.mubr.bf16.gmra.mxu0 %v97
    %v203 = vpop.f32.mrf.mxu0
    %v204 = vadd.f32 %v119, %v203
    %v205 = vpop.f32.mrf.mxu0
    %v206 = vpop.f32.mrf.mxu0
    %v207 = vpop.f32.mrf.mxu0
    %208 = vdwg.mxu0
    %v209 = vmul.f32 %v204, 0.5
    %v210 = vmul.f32 %v204, 0.044715
    %v211 = vmul.f32 %v210, %v204
    %v212 = vmul.f32 %v211, %v204
    %v213 = vadd.f32 %v204, %v212
    %v214 = vmul.f32 %v213, 0.7978846
    %v215 = vtanh.pop %v214
    %v216 = vadd.f32 %v215, 1.0
    %v217 = vmul.f32 %v209, %v216
    %v218 = vpack.c.bf16 %v217, %v217
    %v219 = vld [vmem:[%s5] sm:$0xf]
    %v220 = vld [vmem:[%s5 + $0x4] sm:$0xf]
    %v221 = vld [vmem:[%s6] sm:$0x1]
    %v223 = vlaneseq
    %v224 = vshrl.u32 %v223, 7
    %v225 = vsub.s32 0, %v224
    %v226 = vrot.slane %v221, %v225
    %v230 = vunpack.c.l.b16 %v219
    %v231 = vunpack.c.l.b16 %v220
    %v232 = vpack.c.b16 %v231, %v230
    %v235 = vsel %vm44, %v218, 0
    %237 = vmatprep.subr.bf16.mxu0 0
    %238 = vmatpush1.bf16.msra.mxu0 0
    %239 = vmatprep.subr.bf16.mxu0 0
    %240 = vmatpush1.bf16.msra.mxu0 0
    %241 = vmatprep.subr.bf16.mxu0 0
    %242 = vmatpush1.bf16.msra.mxu0 0
    %243 = vmatprep.subr.bf16.mxu0 0
    %244 = vmatpush1.bf16.msra.mxu0 0
    %245 = vmatprep.subr.bf16.mxu0 0
    %246 = vmatpush1.bf16.msra.mxu0 0
    %247 = vmatprep.subr.bf16.mxu0 0
    %248 = vmatpush1.bf16.msra.mxu0 0
    %249 = vmatprep.subr.bf16.mxu0 0
    %250 = vmatpush1.bf16.msra.mxu0 0
    %251 = vmatprep.subr.bf16.mxu0 0
    %252 = vmatpush1.bf16.msra.mxu0 %v232
    %253 = vmatprep.subr.bf16.mxu0 0
    %254 = vmatpush2.bf16.msra.mxu0 0
    %255 = vmatprep.subr.bf16.mxu0 0
    %256 = vmatpush2.bf16.msra.mxu0 0
    %257 = vmatprep.subr.bf16.mxu0 0
    %258 = vmatpush2.bf16.msra.mxu0 0
    %259 = vmatprep.subr.bf16.mxu0 0
    %260 = vmatpush2.bf16.msra.mxu0 0
    %261 = vmatprep.subr.bf16.mxu0 0
    %262 = vmatpush2.bf16.msra.mxu0 0
    %263 = vmatprep.subr.bf16.mxu0 0
    %264 = vmatpush2.bf16.msra.mxu0 0
    %265 = vmatprep.subr.bf16.mxu0 0
    %266 = vmatpush2.bf16.msra.mxu0 0
    %267 = vmatprep.subr.bf16.mxu0 0
    %268 = vmatpush2.bf16.msra.mxu0 0
    %269 = vmatprep.mubr.bf16.mxu0 0
    %270 = vmatmul.mubr.bf16.gmra.mxu0 %v235
    %v271 = vpop.f32.mrf.mxu0
    %v272 = vadd.f32 %v226, %v271
    %v273 = vpop.f32.mrf.mxu0
    %v274 = vpop.f32.mrf.mxu0
    %v275 = vpop.f32.mrf.mxu0
    %276 = vdwg.mxu0
    %vm277 = vcmask 64512
    %v278 = vsel %vm277, %v272, -inf
    %279 = vmax.xlane.f32.xlu0 %v278
    %v280 = vpop.xlane.xlu0 %279
    %v281 = vsub.f32 %v272, %v280
    %v282 = vmul.f32 %v281, 1.442695
    %v283 = vpow.pop %v282
    %v284 = vsel %vm277, %v283, 0.0
    %285 = vadd.xlane.f32.xlu0 %v284
    %v286 = vpop.xlane.xlu0 %285
    %v287 = vrcp.pop %v286
    %v288 = vmul.f32 %v283, %v287
    %289 = vst.msk [vmem:[#allocation2] sm:$0xff] %vm277, %v288
    // Predicated region
    $region30: #{net_forward.1} parent=1 // pred_check
      _
    $region31: #{net_forward.1} parent=1 // pred_check_branch
      %291 = sbr.rel (0) target = $region33
    $region32: #{net_forward.1} parent=1 // pred_region
      %s293 = ssub.s32 128, 128
      %294 = vsyncadd [#allocation3], %s293
      %s296 = sshll.u32 [#allocation2], 4
      %s297 = int_to_ptr.vmem [resolvable:$true] %s296
      %299 = dma.vmem_to_hbm [thread:$0]  %s297, 128, %s7, [#allocation3]
    $region33: #{net_forward.1} parent=1 // pred_fallthru
      _
    // Predicated region
    $region34: #{net_forward.1} parent=1 // pred_check
      _
    $region35: #{net_forward.1} parent=1 // pred_check_branch
      %301 = sbr.rel (0) target = $region37
    $region36: #{net_forward.1} parent=1 // pred_region
      %302 = dma.done [#allocation3], 128
    $region37: #{net_forward.1} parent=1 // pred_fallthru
      _
    %303 = vsyncpa [#allocation3], 1

</llo_original>
